<compile_context>
chip_gen: v6e
topology: v6e:2x2x1
jax: 0.10.0
libtpu: 0.0.40
codegen_flags: <defaults>
</compile_context>

<pallas_src>
import functools

import jax
import jax.numpy as jnp
from jax.experimental import pallas as pl
from jax.experimental.pallas import tpu as pltpu


def _round_up(x: int, m: int) -> int:
    return (x + m - 1) // m * m


def _head_kernel_single(x_ref, w1_ref, b1_ref, w2_ref, b2_ref, o_ref):
    """Whole reduction in one block (n_k == 1): no accumulator scratch, no phases.

    x_ref:  [bm, H]   CLS features (native dtype, bf16 preferred)
    w1_ref: [H, H]    dense weight (stored [in, out] == PyTorch weight.T), fetched once
    b1_ref: [1, H]    dense bias
    w2_ref: [H, Lp]   out_proj weight (lane-padded labels)
    b2_ref: [1, Lp]   out_proj bias
    o_ref:  [bm, Lp]  f32 logits
    """
    h = jnp.dot(x_ref[...], w1_ref[...], preferred_element_type=jnp.float32)
    h = jnp.tanh(h + b1_ref[...].astype(jnp.float32))
    logits = jnp.dot(h.astype(w2_ref.dtype), w2_ref[...],
                     preferred_element_type=jnp.float32)
    o_ref[...] = (logits + b2_ref[...].astype(jnp.float32)).astype(o_ref.dtype)


def _head_kernel_ktiled(x_ref, w1_ref, b1_ref, w2_ref, b2_ref, o_ref, acc_ref):
    """K-tiled path (n_k > 1): f32 VMEM accumulator with pl.when init/finalize."""
    k = pl.program_id(1)

    @pl.when(k == 0)
    def _init():
        acc_ref[...] = jnp.zeros_like(acc_ref)

    acc_ref[...] += jnp.dot(x_ref[...], w1_ref[...],
                            preferred_element_type=jnp.float32)

    @pl.when(k == pl.num_programs(1) - 1)
    def _finalize():
        h = jnp.tanh(acc_ref[...] + b1_ref[...].astype(jnp.float32))
        logits = jnp.dot(h.astype(w2_ref.dtype), w2_ref[...],
                         preferred_element_type=jnp.float32)
        o_ref[...] = (logits + b2_ref[...].astype(jnp.float32)).astype(o_ref.dtype)


@functools.partial(jax.jit, static_argnames=("block_k", "block_b"))
def roberta_classification_head(features, w_dense, b_dense, w_out, b_out,
                                *, block_k=None, block_b=512):
    """RobertaClassificationHead forward (eval mode).

    features: [B, S, H]; w_dense: [H, H] (stored [in, out] == PyTorch weight.T);
    b_dense: [H]; w_out: [H, L]; b_out: [L].  Returns f32 logits [B, L].
    """
    B, S, H = features.shape
    L = w_out.shape[-1]

    # Glue: CLS token slice stays in XLA (a size-1 second-minor block is not BlockSpec
    # friendly); allow_input_fusion folds it into the pallas_call operand.
    x = features[:, 0, :]                                   # [B, H]
    itemsize = x.dtype.itemsize
    sub = 16 if x.dtype == jnp.bfloat16 else 8

    # ---- generation-aware VMEM budget (v7x: 64 MiB physical; v5e/v6e: 128 MiB) -------
    try:
        vmem_cap = int(pltpu.get_tpu_info().vmem_capacity_bytes)
    except Exception:  # no device / attr: assume the smallest (v7x) so we never OOM
        vmem_cap = 64 << 20
    budget = min(vmem_cap // 2, 48 << 20)

    # ---- batch tiling: n_b = 1 for realistic classification batches ------------------
    Bp = _round_up(B, sub)
    if Bp <= block_b:
        bm = Bp
    else:
        bm = _round_up(block_b, sub)
        Bp = _round_up(B, bm)
    n_b = Bp // bm

    # ---- lane-dense labels: pad num_labels to 128 lanes (unmasked vst) ---------------
    Lp = _round_up(max(L, 128), 128)

    # ---- k tiling: largest divisor of H satisfying (8,128) rules and the VMEM budget -
    # (divisor => no jnp.pad HBM round trip on the dominant HxH weight)
    def vmem_need(tk):
        need = 2 * (bm * tk + tk * H) * itemsize            # x, w1 double-buffered
        need += 2 * (H * Lp + H + Lp) * itemsize            # resident w_out + biases
        need += 2 * bm * Lp * 4                             # f32 output double buffer
        if tk < H:
            need += bm * H * 4                              # f32 accumulator scratch
        return need

    legal = [d for d in range(H, 0, -1) if H % d == 0 and (d == H or d % 128 == 0)]
    cap = H if block_k is None else block_k
    fitting = [d for d in legal if d <= cap and vmem_need(d) <= budget]
    tk = fitting[0] if fitting else legal[-1]
    n_k = H // tk

    vmem_limit = int(min(vmem_cap, max(32 << 20, vmem_need(tk) + (8 << 20))))

    # ---- operand prep (zero padding is inert and sliced off afterwards) --------------
    if Bp != B:
        x = jnp.pad(x, ((0, Bp - B), (0, 0)))
    if Lp != L:
        w2 = jnp.pad(w_out, ((0, 0), (0, Lp - L)))
        b2 = jnp.pad(b_out, (0, Lp - L))
    else:
        w2, b2 = w_out, b_out
    b1 = b_dense.reshape(1, H)
    b2 = b2.reshape(1, Lp)

    # w1's block index is constant when n_k == 1, so it is fetched exactly once; with
    # k-tiling it is re-fetched once per batch tile -> reflect that in bytes_accessed.
    w1_reads = 1 if n_k == 1 else n_b
    nbytes = lambda a: a.size * a.dtype.itemsize
    cost = pl.CostEstimate(
        flops=2 * Bp * H * H + 2 * Bp * H * Lp,
        transcendentals=Bp * H,
        bytes_accessed=(nbytes(x) + w1_reads * nbytes(w_dense) + nbytes(b1)
                        + nbytes(w2) + nbytes(b2) + Bp * Lp * 4),
    )

    if n_k == 1:
        out = pl.pallas_call(
            _head_kernel_single,
            out_shape=jax.ShapeDtypeStruct((Bp, Lp), jnp.float32),
            grid_spec=pltpu.PrefetchScalarGridSpec(
                num_scalar_prefetch=0,
                grid=(n_b,),
                in_specs=[
                    pl.BlockSpec((bm, H), lambda i: (i, 0)),   # x (streamed)
                    pl.BlockSpec((H, H), lambda i: (0, 0)),    # w_dense (fetched once)
                    pl.BlockSpec((1, H), lambda i: (0, 0)),    # b_dense
                    pl.BlockSpec((H, Lp), lambda i: (0, 0)),   # w_out
                    pl.BlockSpec((1, Lp), lambda i: (0, 0)),   # b_out
                ],
                out_specs=pl.BlockSpec((bm, Lp), lambda i: (i, 0)),
            ),
            compiler_params=pltpu.CompilerParams(
                dimension_semantics=("arbitrary",),
                vmem_limit_bytes=vmem_limit,
                allow_input_fusion=[True, False, False, False, False],
            ),
            cost_estimate=cost,
        )(x, w_dense, b1, w2, b2)
    else:
        out = pl.pallas_call(
            _head_kernel_ktiled,
            out_shape=jax.ShapeDtypeStruct((Bp, Lp), jnp.float32),
            grid_spec=pltpu.PrefetchScalarGridSpec(
                num_scalar_prefetch=0,
                grid=(n_b, n_k),                               # reduction axis last
                in_specs=[
                    pl.BlockSpec((bm, tk), lambda i, k: (i, k)),  # x
                    pl.BlockSpec((tk, H), lambda i, k: (k, 0)),   # w_dense (k-streamed)
                    pl.BlockSpec((1, H), lambda i, k: (0, 0)),    # b_dense
                    pl.BlockSpec((H, Lp), lambda i, k: (0, 0)),   # w_out
                    pl.BlockSpec((1, Lp), lambda i, k: (0, 0)),   # b_out
                ],
                out_specs=pl.BlockSpec((bm, Lp), lambda i, k: (i, 0)),
                scratch_shapes=[pltpu.VMEM((bm, H), jnp.float32)],
            ),
            compiler_params=pltpu.CompilerParams(
                dimension_semantics=("parallel", "arbitrary"),
                vmem_limit_bytes=vmem_limit,
                allow_input_fusion=[True, False, False, False, False],
            ),
            cost_estimate=cost,
        )(x, w_dense, b1, w2, b2)

    return out[:B, :L]


if __name__ == "__main__":
    def reference(features, w1, b1, w2, b2):
        xf = features[:, 0, :].astype(jnp.float32)
        h = jnp.tanh(xf @ w1.astype(jnp.float32) + b1.astype(jnp.float32))
        return h @ w2.astype(jnp.float32) + b2.astype(jnp.float32)

    # --- small config consistent with the module: B=2, S=8, H=32, num_labels=3 -------
    B, S, H, L = 2, 8, 32, 3
    key = jax.random.PRNGKey(0)
    k_feat, k_w1, k_b1, k_w2, k_b2 = jax.random.split(key, 5)

    features = jax.random.normal(k_feat, (B, S, H), dtype=jnp.float32)
    # Weights stored as [in, out] (PyTorch weight.T) so the kernel computes x @ W + b.
    w_dense = jax.random.normal(k_w1, (H, H), dtype=jnp.float32) * 0.05
    b_dense = jax.random.normal(k_b1, (H,), dtype=jnp.float32) * 0.05
    w_out = jax.random.normal(k_w2, (H, L), dtype=jnp.float32) * 0.05
    b_out = jax.random.normal(k_b2, (L,), dtype=jnp.float32) * 0.05

    # 1) f32 parameters/activations (single-block path: n_k == 1, no accumulator).
    logits = jax.block_until_ready(
        roberta_classification_head(features, w_dense, b_dense, w_out, b_out))
    ref = reference(features, w_dense, b_dense, w_out, b_out)
    assert logits.shape == (B, L)
    assert logits.dtype == jnp.float32
    assert jnp.allclose(logits, ref, atol=1e-4, rtol=1e-4), \
        f"f32 mismatch: {jnp.max(jnp.abs(logits - ref))}"

    # 2) bf16 parameters/activations (MXU-native), f32 accumulation + f32 logits.
    bf = lambda a: a.astype(jnp.bfloat16)
    logits_bf16 = jax.block_until_ready(
        roberta_classification_head(bf(features), bf(w_dense), bf(b_dense),
                                    bf(w_out), bf(b_out)))
    assert logits_bf16.dtype == jnp.float32
    assert jnp.allclose(logits_bf16, ref, atol=2e-2, rtol=2e-2), \
        f"bf16 mismatch: {jnp.max(jnp.abs(logits_bf16 - ref))}"

    # 3) larger hidden + uneven batch with forced k-tiling: exercises the accumulator
    #    path, multi-step K accumulation, and batch/sublane padding.
    B2, S2, H2, L2 = 10, 4, 256, 3
    k_feat, k_w1, k_b1, k_w2, k_b2 = jax.random.split(jax.random.PRNGKey(1), 5)
    features2 = jax.random.normal(k_feat, (B2, S2, H2), dtype=jnp.float32)
    w_dense2 = jax.random.normal(k_w1, (H2, H2), dtype=jnp.float32) * 0.02
    b_dense2 = jax.random.normal(k_b1, (H2,), dtype=jnp.float32) * 0.02
    w_out2 = jax.random.normal(k_w2, (H2, L2), dtype=jnp.float32) * 0.02
    b_out2 = jax.random.normal(k_b2, (L2,), dtype=jnp.float32) * 0.02

    logits2 = jax.block_until_ready(
        roberta_classification_head(features2, w_dense2, b_dense2, w_out2, b_out2,
                                    block_k=128))
    ref2 = reference(features2, w_dense2, b_dense2, w_out2, b_out2)
    assert logits2.shape == (B2, L2)
    assert jnp.allclose(logits2, ref2, atol=1e-4, rtol=1e-4), \
        f"tiled mismatch: {jnp.max(jnp.abs(logits2 - ref2))}"

    print("KERNEL_OK")
</pallas_src>

<mosaic_0001>
module attributes {stable_mosaic.version = 11 : i64} {
  func.func @_head_kernel_single(%arg0: i32, %arg1: memref<8x32xf32, #tpu.memory_space<vmem>>, %arg2: memref<32x32xf32, #tpu.memory_space<vmem>>, %arg3: memref<1x32xf32, #tpu.memory_space<vmem>>, %arg4: memref<32x128xf32, #tpu.memory_space<vmem>>, %arg5: memref<1x128xf32, #tpu.memory_space<vmem>>, %arg6: memref<8x128xf32, #tpu.memory_space<vmem>>) attributes {dimension_semantics = [#tpu.dimension_semantics<arbitrary>], iteration_bounds = array<i64: 1>, scalar_prefetch = 0 : i64, scratch_operands = 0 : i64, tpu.core_type = #tpu.core_type<tc>, window_params = [{transform_indices = @transform_0, window_bounds = array<i64: 8, 32>}, {pipeline_mode = #tpu.pipeline_mode<synchronous>, transform_indices = @transform_1, window_bounds = array<i64: 32, 32>}, {pipeline_mode = #tpu.pipeline_mode<synchronous>, transform_indices = @transform_2, window_bounds = array<i64: 1, 32>}, {pipeline_mode = #tpu.pipeline_mode<synchronous>, transform_indices = @transform_3, window_bounds = array<i64: 32, 128>}, {pipeline_mode = #tpu.pipeline_mode<synchronous>, transform_indices = @transform_4, window_bounds = array<i64: 1, 128>}, {transform_indices = @transform_5, window_bounds = array<i64: 8, 128>}]} {
    %c0 = arith.constant 0 : index
    %c0_0 = arith.constant 0 : index
    %0 = vector.load %arg1[%c0, %c0_0] : memref<8x32xf32, #tpu.memory_space<vmem>>, vector<8x32xf32>
    %c0_1 = arith.constant 0 : index
    %c0_2 = arith.constant 0 : index
    %1 = vector.load %arg2[%c0_1, %c0_2] : memref<32x32xf32, #tpu.memory_space<vmem>>, vector<32x32xf32>
    %cst = arith.constant dense<0.000000e+00> : vector<8x32xf32>
    %2 = tpu.matmul %0, %1, %cst {dimension_numbers = #tpu.dot_dimension_numbers<[1], [0], [0], [1], [0, 0, 1, 1], [], []>} : vector<8x32xf32>, vector<32x32xf32>, vector<8x32xf32> -> vector<8x32xf32>
    %c0_3 = arith.constant 0 : index
    %c0_4 = arith.constant 0 : index
    %3 = vector.load %arg3[%c0_3, %c0_4] : memref<1x32xf32, #tpu.memory_space<vmem>>, vector<1x32xf32>
    %4 = vector.broadcast %3 : vector<1x32xf32> to vector<8x32xf32>
    %5 = arith.addf %2, %4 : vector<8x32xf32>
    %6 = math.tanh %5 : vector<8x32xf32>
    %c0_5 = arith.constant 0 : index
    %c0_6 = arith.constant 0 : index
    %7 = vector.load %arg4[%c0_5, %c0_6] : memref<32x128xf32, #tpu.memory_space<vmem>>, vector<32x128xf32>
    %cst_7 = arith.constant dense<0.000000e+00> : vector<8x128xf32>
    %8 = tpu.matmul %6, %7, %cst_7 {dimension_numbers = #tpu.dot_dimension_numbers<[1], [0], [0], [1], [0, 0, 1, 1], [], []>} : vector<8x32xf32>, vector<32x128xf32>, vector<8x128xf32> -> vector<8x128xf32>
    %c0_8 = arith.constant 0 : index
    %c0_9 = arith.constant 0 : index
    %9 = vector.load %arg5[%c0_8, %c0_9] : memref<1x128xf32, #tpu.memory_space<vmem>>, vector<1x128xf32>
    %10 = vector.broadcast %9 : vector<1x128xf32> to vector<8x128xf32>
    %11 = arith.addf %8, %10 : vector<8x128xf32>
    %c0_10 = arith.constant 0 : index
    %c0_11 = arith.constant 0 : index
    %12 = vector.load %arg6[%c0_10, %c0_11] : memref<8x128xf32, #tpu.memory_space<vmem>>, vector<8x128xf32>
    tpu.vector_store %arg6[%c0_10, %c0_11], %11 {strides = array<i32>} : memref<8x128xf32, #tpu.memory_space<vmem>>, vector<8x128xf32>,
    return
  }
  func.func @transform_0(%arg0: i32) -> (i32, i32) {
    %c0_i32 = arith.constant 0 : i32
    %c0_i32_0 = arith.constant 0 : i32
    return %arg0, %c0_i32 : i32, i32
  }
  func.func @transform_1(%arg0: i32) -> (i32, i32) {
    %c0_i32 = arith.constant 0 : i32
    %c0_i32_0 = arith.constant 0 : i32
    %c0_i32_1 = arith.constant 0 : i32
    return %c0_i32, %c0_i32_0 : i32, i32
  }
  func.func @transform_2(%arg0: i32) -> (i32, i32) {
    %c0_i32 = arith.constant 0 : i32
    %c0_i32_0 = arith.constant 0 : i32
    %c0_i32_1 = arith.constant 0 : i32
    return %c0_i32, %c0_i32_0 : i32, i32
  }
  func.func @transform_3(%arg0: i32) -> (i32, i32) {
    %c0_i32 = arith.constant 0 : i32
    %c0_i32_0 = arith.constant 0 : i32
    %c0_i32_1 = arith.constant 0 : i32
    return %c0_i32, %c0_i32_0 : i32, i32
  }
  func.func @transform_4(%arg0: i32) -> (i32, i32) {
    %c0_i32 = arith.constant 0 : i32
    %c0_i32_0 = arith.constant 0 : i32
    %c0_i32_1 = arith.constant 0 : i32
    return %c0_i32, %c0_i32_0 : i32, i32
  }
  func.func @transform_5(%arg0: i32) -> (i32, i32) {
    %c0_i32 = arith.constant 0 : i32
    %c0_i32_0 = arith.constant 0 : i32
    return %arg0, %c0_i32 : i32, i32
  }
}

</mosaic_0001>

<llo_original>
// kernel: roberta_classification_head.2
$region0: #{roberta_classification_head.2}
  #allocation0 [shape = 'u32[]', space=smem, size = 0x4, offset = 0x4, fixed_abs, tag = 'smem constant byte address 0x4 - core index']
  #allocation1 [shape = 'u32[144,128]{1,0:T(1,128)}', space=vmem, size = 0x12000, scoped, tag = 'internal scratch']
  #allocation2 [shape = 'u32[2048]{0}', space=vmem, size = 0x2000, scoped, tag = 'scoped memory for roberta_classification_head.2']
  #allocation3 [shape = 'u32[2048]{0}', space=vmem, size = 0x2000, scoped, tag = 'scoped memory for roberta_classification_head.2']
  #allocation4 [shape = 'u32[2048]{0}', space=vmem, size = 0x2000, scoped, tag = 'scoped memory for roberta_classification_head.2']
  #allocation5 [shape = 'u32[2048]{0}', space=vmem, size = 0x2000, scoped, tag = 'scoped memory for roberta_classification_head.2']
  #allocation6 [shape = 'u32[2048]{0}', space=vmem, size = 0x2000, scoped, tag = 'scoped memory for roberta_classification_head.2']
  %s0 = inlined_call_operand.vmem [shape: f32[32,32], index: 0, kind: input, shape index: {}]
  %s1 = inlined_call_operand.vmem [shape: f32[1,32], index: 1, kind: input, shape index: {}]
  %s2 = inlined_call_operand.vmem [shape: f32[32,128], index: 2, kind: input, shape index: {}]
  %s3 = inlined_call_operand.vmem [shape: f32[1,128], index: 3, kind: input, shape index: {}]
  %s4 = inlined_call_operand.vmem [shape: f32[2,32], index: 4, kind: input, shape index: {}]
  %s5 = inlined_call_operand.<no memory space> [shape: f32[], index: 5, kind: input, shape index: {}]
  %s6 = inlined_call_operand.vmem [shape: f32[8,128], index: 6, kind: output, shape index: {}]
  %s7 = sld [smem:[#allocation0]]
  $region30: #{roberta_classification_head.2} parent=0
    _
  %s9 = ssub.s32 1, %s7
  %s10 = scalar_select 0, %s9, %s7
  %v11 = vstv %s5
  $region1: #{roberta_classification_head.2} parent=0
    #allocation7 [shape = 'u8[4096]{0}', space=vmem, size = 0x1000, dematerialized = true, scoped, tag = 'FusionAdapter Buffer %fusion.1 = f32[8,32]{1,0:T(8,128)} fusion(%param_4.1, %param_5), kind=kLoop, calls=%fused_computation.1.clone, metadata={op_name="jit(roberta_classification_head)/jit(_pad)/pad" stack_frame_id=8}']
    // Predicated region
    $region2: #{roberta_classification_head.2} parent=1 // pred_check
      _
    $region3: #{roberta_classification_head.2} parent=1 // pred_check_branch
      %13 = sbr.rel (0) target = $region5
    $region4: #{roberta_classification_head.2} parent=1 // pred_region
      _
    $region5: #{roberta_classification_head.2} parent=1 // pred_fallthru
      _
    // Predicated region
    $region6: #{roberta_classification_head.2} parent=1 // pred_check
      _
    $region7: #{roberta_classification_head.2} parent=1 // pred_check_branch
      %15 = sbr.rel (0) target = $region9
    $region8: #{roberta_classification_head.2} parent=1 // pred_region
      _
    $region9: #{roberta_classification_head.2} parent=1 // pred_fallthru
      _
    // Predicated region
    $region10: #{roberta_classification_head.2} parent=1 // pred_check
      _
    $region11: #{roberta_classification_head.2} parent=1 // pred_check_branch
      %17 = sbr.rel (0) target = $region13
    $region12: #{roberta_classification_head.2} parent=1 // pred_region
      _
    $region13: #{roberta_classification_head.2} parent=1 // pred_fallthru
      _
    // Predicated region
    $region14: #{roberta_classification_head.2} parent=1 // pred_check
      _
    $region15: #{roberta_classification_head.2} parent=1 // pred_check_branch
      %19 = sbr.rel (0) target = $region17
    $region16: #{roberta_classification_head.2} parent=1 // pred_region
      _
    $region17: #{roberta_classification_head.2} parent=1 // pred_fallthru
      _
    // Predicated region
    $region18: #{roberta_classification_head.2} parent=1 // pred_check
      _
    $region19: #{roberta_classification_head.2} parent=1 // pred_check_branch
      %21 = sbr.rel (0) target = $region21
    $region20: #{roberta_classification_head.2} parent=1 // pred_region
      _
    $region21: #{roberta_classification_head.2} parent=1 // pred_fallthru
      _
    %v22 = vld [vmem:[%s4] sm:$0x3]
    %v23 = vlaneseq
    %v24 = vshrl.u32 %v23, 7
    %vm26 = vcmp.lt.s32.totalorder %v24, 2
    %v27 = vsel %vm26, %v22, %v11
    %v28 = vlaneseq
    %v29 = vand.u32 %v28, 127
    %vm31 = vcmp.lt.s32.totalorder %v29, 32
    %v32 = vsel %vm31, %v27, %v11
    %s34 = ssub.s32 256, 1
    %35 = vst [vmem:[#allocation7] sm:%s34] %v32
    %v36 = vld [vmem:[#allocation7] sm:$0xff]
    %v37 = vld [vmem:[%s0] sm:$0xff]
    %v38 = vld [vmem:[%s0 + $0x8] sm:$0xff]
    %v39 = vld [vmem:[%s0 + $0x10] sm:$0xff]
    %v40 = vld [vmem:[%s0 + $0x18] sm:$0xff]
    %v41 = vld [vmem:[%s1] sm:$0x1]
    %v43 = vlaneseq
    %v44 = vshrl.u32 %v43, 7
    %v45 = vsub.s32 0, %v44
    %v46 = vrot.slane %v41, %v45
    %vm48 = vcmask 261120
    %v50 = vsel %vm48, %v36, 0
    %52 = vmatprep.subr.mxu0 0.0
    %53 = vmatpush1.msra.mxu0 0.0
    %54 = vmatprep.subr.mxu0 0.0
    %55 = vmatpush1.msra.mxu0 0.0
    %56 = vmatprep.subr.mxu0 0.0
    %57 = vmatpush1.msra.mxu0 0.0
    %58 = vmatprep.subr.mxu0 0.0
    %59 = vmatpush1.msra.mxu0 0.0
    %60 = vmatprep.subr.mxu0 0.0
    %61 = vmatpush1.msra.mxu0 0.0
    %62 = vmatprep.subr.mxu0 0.0
    %63 = vmatpush1.msra.mxu0 0.0
    %64 = vmatprep.subr.mxu0 0.0
    %65 = vmatpush1.msra.mxu0 0.0
    %66 = vmatprep.subr.mxu0 0.0
    %67 = vmatpush1.msra.mxu0 0.0
    %68 = vmatprep.subr.mxu0 0.0
    %69 = vmatpush1.msra.mxu0 0.0
    %70 = vmatprep.subr.mxu0 0.0
    %71 = vmatpush1.msra.mxu0 0.0
    %72 = vmatprep.subr.mxu0 0.0
    %73 = vmatpush1.msra.mxu0 0.0
    %74 = vmatprep.subr.mxu0 0.0
    %75 = vmatpush1.msra.mxu0 0.0
    %76 = vmatprep.subr.mxu0 0.0
    %77 = vmatpush1.msra.mxu0 %v40
    %78 = vmatprep.subr.mxu0 0.0
    %79 = vmatpush1.msra.mxu0 %v39
    %80 = vmatprep.subr.mxu0 0.0
    %81 = vmatpush1.msra.mxu0 %v38
    %82 = vmatprep.subr.mxu0 0.0
    %83 = vmatpush1.msra.mxu0 %v37
    %84 = vmatprep.subr.mxu0 0.0
    %85 = vmatpush2.msra.mxu0 0.0
    %86 = vmatprep.subr.mxu0 0.0
    %87 = vmatpush2.msra.mxu0 0.0
    %88 = vmatprep.subr.mxu0 0.0
    %89 = vmatpush2.msra.mxu0 0.0
    %90 = vmatprep.subr.mxu0 0.0
    %91 = vmatpush2.msra.mxu0 0.0
    %92 = vmatprep.subr.mxu0 0.0
    %93 = vmatpush2.msra.mxu0 0.0
    %94 = vmatprep.subr.mxu0 0.0
    %95 = vmatpush2.msra.mxu0 0.0
    %96 = vmatprep.subr.mxu0 0.0
    %97 = vmatpush2.msra.mxu0 0.0
    %98 = vmatprep.subr.mxu0 0.0
    %99 = vmatpush2.msra.mxu0 0.0
    %100 = vmatprep.subr.mxu0 0.0
    %101 = vmatpush2.msra.mxu0 0.0
    %102 = vmatprep.subr.mxu0 0.0
    %103 = vmatpush2.msra.mxu0 0.0
    %104 = vmatprep.subr.mxu0 0.0
    %105 = vmatpush2.msra.mxu0 0.0
    %106 = vmatprep.subr.mxu0 0.0
    %107 = vmatpush2.msra.mxu0 0.0
    %108 = vmatprep.subr.mxu0 0.0
    %109 = vmatpush2.msra.mxu0 0.0
    %110 = vmatprep.subr.mxu0 0.0
    %111 = vmatpush2.msra.mxu0 0.0
    %112 = vmatprep.subr.mxu0 0.0
    %113 = vmatpush2.msra.mxu0 0.0
    %114 = vmatprep.subr.mxu0 0.0
    %115 = vmatpush2.msra.mxu0 0.0
    %116 = vmatprep.mubr.f32.mxu0 0.0
    %117 = vmatmul.mubr.f32.gmra.mxu0 %v50
    %v118 = vpop.f32.mrf.mxu0
    %v119 = vadd.f32 %v46, %v118
    %v120 = vpop.f32.mrf.mxu0
    %121 = vdwg.mxu0
    %v122 = vtanh.pop %v119
    %v123 = vld [vmem:[%s2] sm:$0xff]
    %v124 = vld [vmem:[%s2 + $0x8] sm:$0xff]
    %v125 = vld [vmem:[%s2 + $0x10] sm:$0xff]
    %v126 = vld [vmem:[%s2 + $0x18] sm:$0xff]
    %v127 = vld [vmem:[%s3] sm:$0x1]
    %v129 = vlaneseq
    %v130 = vshrl.u32 %v129, 7
    %v131 = vsub.s32 0, %v130
    %v132 = vrot.slane %v127, %v131
    %v135 = vsel %vm48, %v122, 0
    %137 = vmatprep.subr.mxu0 0.0
    %138 = vmatpush1.msra.mxu0 0.0
    %139 = vmatprep.subr.mxu0 0.0
    %140 = vmatpush1.msra.mxu0 0.0
    %141 = vmatprep.subr.mxu0 0.0
    %142 = vmatpush1.msra.mxu0 0.0
    %143 = vmatprep.subr.mxu0 0.0
    %144 = vmatpush1.msra.mxu0 0.0
    %145 = vmatprep.subr.mxu0 0.0
    %146 = vmatpush1.msra.mxu0 0.0
    %147 = vmatprep.subr.mxu0 0.0
    %148 = vmatpush1.msra.mxu0 0.0
    %149 = vmatprep.subr.mxu0 0.0
    %150 = vmatpush1.msra.mxu0 0.0
    %151 = vmatprep.subr.mxu0 0.0
    %152 = vmatpush1.msra.mxu0 0.0
    %153 = vmatprep.subr.mxu0 0.0
    %154 = vmatpush1.msra.mxu0 0.0
    %155 = vmatprep.subr.mxu0 0.0
    %156 = vmatpush1.msra.mxu0 0.0
    %157 = vmatprep.subr.mxu0 0.0
    %158 = vmatpush1.msra.mxu0 0.0
    %159 = vmatprep.subr.mxu0 0.0
    %160 = vmatpush1.msra.mxu0 0.0
    %161 = vmatprep.subr.mxu0 0.0
    %162 = vmatpush1.msra.mxu0 %v126
    %163 = vmatprep.subr.mxu0 0.0
    %164 = vmatpush1.msra.mxu0 %v125
    %165 = vmatprep.subr.mxu0 0.0
    %166 = vmatpush1.msra.mxu0 %v124
    %167 = vmatprep.subr.mxu0 0.0
    %168 = vmatpush1.msra.mxu0 %v123
    %169 = vmatprep.subr.mxu0 0.0
    %170 = vmatpush2.msra.mxu0 0.0
    %171 = vmatprep.subr.mxu0 0.0
    %172 = vmatpush2.msra.mxu0 0.0
    %173 = vmatprep.subr.mxu0 0.0
    %174 = vmatpush2.msra.mxu0 0.0
    %175 = vmatprep.subr.mxu0 0.0
    %176 = vmatpush2.msra.mxu0 0.0
    %177 = vmatprep.subr.mxu0 0.0
    %178 = vmatpush2.msra.mxu0 0.0
    %179 = vmatprep.subr.mxu0 0.0
    %180 = vmatpush2.msra.mxu0 0.0
    %181 = vmatprep.subr.mxu0 0.0
    %182 = vmatpush2.msra.mxu0 0.0
    %183 = vmatprep.subr.mxu0 0.0
    %184 = vmatpush2.msra.mxu0 0.0
    %185 = vmatprep.subr.mxu0 0.0
    %186 = vmatpush2.msra.mxu0 0.0
    %187 = vmatprep.subr.mxu0 0.0
    %188 = vmatpush2.msra.mxu0 0.0
    %189 = vmatprep.subr.mxu0 0.0
    %190 = vmatpush2.msra.mxu0 0.0
    %191 = vmatprep.subr.mxu0 0.0
    %192 = vmatpush2.msra.mxu0 0.0
    %193 = vmatprep.subr.mxu0 0.0
    %194 = vmatpush2.msra.mxu0 0.0
    %195 = vmatprep.subr.mxu0 0.0
    %196 = vmatpush2.msra.mxu0 0.0
    %197 = vmatprep.subr.mxu0 0.0
    %198 = vmatpush2.msra.mxu0 0.0
    %199 = vmatprep.subr.mxu0 0.0
    %200 = vmatpush2.msra.mxu0 0.0
    %201 = vmatprep.mubr.f32.mxu0 0.0
    %202 = vmatmul.mubr.f32.gmra.mxu0 %v135
    %v203 = vpop.f32.mrf.mxu0
    %v204 = vadd.f32 %v132, %v203
    %v205 = vpop.f32.mrf.mxu0
    %206 = vdwg.mxu0
    %207 = vst [vmem:[%s6] sm:$0xff] %v204
    // Predicated region
    $region22: #{roberta_classification_head.2} parent=1 // pred_check
      _
    $region23: #{roberta_classification_head.2} parent=1 // pred_check_branch
      %209 = sbr.rel (0) target = $region25
    $region24: #{roberta_classification_head.2} parent=1 // pred_region
      _
    $region25: #{roberta_classification_head.2} parent=1 // pred_fallthru
      _
    // Predicated region
    $region26: #{roberta_classification_head.2} parent=1 // pred_check
      _
    $region27: #{roberta_classification_head.2} parent=1 // pred_check_branch
      %211 = sbr.rel (0) target = $region29
    $region28: #{roberta_classification_head.2} parent=1 // pred_region
      _
    $region29: #{roberta_classification_head.2} parent=1 // pred_fallthru
      _

</llo_original>
